<compile_context>
chip_gen: v6e
topology: v6e:2x2x1
jax: 0.10.0
libtpu: 0.0.40
codegen_flags: <defaults>
</compile_context>

<pallas_src>
import functools

import jax
import jax.numpy as jnp
from jax.experimental import pallas as pl
from jax.experimental.pallas import tpu as pltpu


def _layernorm_epilogue(y, gamma, beta, eps, out_dtype):
    """Std-based LayerNorm (unbiased N-1, sigma clamped to eps). y is f32."""
    n = y.shape[-1]
    # One-pass moments: var = (sum(y^2) - sum(y)*mu) / (n - 1).
    sum_y = jnp.sum(y, axis=-1, keepdims=True)
    sum_yy = jnp.sum(y * y, axis=-1, keepdims=True)
    mu = sum_y * (1.0 / n)
    var = jnp.maximum((sum_yy - sum_y * mu) * (1.0 / (n - 1)), 0.0)
    # max(sqrt(var), eps) divide  ->  min(rsqrt(var), 1/eps) multiply (EUP).
    inv_sigma = jnp.minimum(jax.lax.rsqrt(var), 1.0 / eps)
    normed = (y - mu) * inv_sigma
    return (normed * gamma + beta).astype(out_dtype)


def _positionwise_kernel(x_ref, w1_ref, b1_ref, w2_ref, b2_ref,
                         gamma_ref, beta_ref, o_ref, acc_ref, *,
                         eps, n_ff_steps):
    # Grid: (row tiles [parallel], d_ff slabs [arbitrary / reduction]).
    j = pl.program_id(1)

    # Conv1d(d_model, d_ff, 1) slab: x @ W1[:, slab] + b1, ReLU.  Operands stay
    # in their native dtype (bf16 feeds bf16 MXU); accumulate in f32.  Cast the
    # hidden activation to the W2 dtype immediately so the tile_m x tile_ff
    # intermediate is narrow when the weights are.
    h = jnp.dot(x_ref[...], w1_ref[...], preferred_element_type=jnp.float32)
    h = jnp.maximum(h + b1_ref[...].astype(jnp.float32), 0.0).astype(w2_ref.dtype)

    # Conv1d(d_ff, d_model, 1) partial contraction over this d_ff slab.
    partial = jnp.dot(h, w2_ref[...], preferred_element_type=jnp.float32)

    # TODO(synk): nn.Dropout is identity in eval mode; training-mode dropout not modeled.
    if n_ff_steps == 1:
        # Single d_ff slab: skip the VMEM accumulator round-trip entirely.
        y = (x_ref[...].astype(jnp.float32)
             + b2_ref[...].astype(jnp.float32) + partial)
        o_ref[...] = _layernorm_epilogue(
            y, gamma_ref[...].astype(jnp.float32),
            beta_ref[...].astype(jnp.float32), eps, o_ref.dtype)
    else:
        @pl.when(j == 0)
        def _():
            # Fold residual + output bias into the accumulator init: removes
            # the zero-fill store and two tile-sized VPU adds in the epilogue.
            acc_ref[...] = (x_ref[...].astype(jnp.float32)
                            + b2_ref[...].astype(jnp.float32) + partial)

        @pl.when(j > 0)
        def _():
            acc_ref[...] += partial

        @pl.when(j == n_ff_steps - 1)
        def _():
            o_ref[...] = _layernorm_epilogue(
                acc_ref[...], gamma_ref[...].astype(jnp.float32),
                beta_ref[...].astype(jnp.float32), eps, o_ref.dtype)


def _round_up(x, m):
    return ((x + m - 1) // m) * m


def _sublane_multiple(dtype):
    # f32 -> 8, bf16 -> 16, int8/fp8 -> 32 row packing.
    return max(8, 32 // jnp.dtype(dtype).itemsize)


def _vmem_capacity_bytes():
    try:
        cap = getattr(pltpu.get_tpu_info(), "vmem_capacity_bytes", None)
        if cap:
            return int(cap)
    except Exception:
        pass
    return 64 << 20  # conservative (v7x per-TensorCore VMEM)


def _pick_tile_ff(d_ff, d_model, wdt, vmem_cap):
    # Prefer fully VMEM-resident weights: with tile_ff == d_ff the W1/W2 block
    # indices are constant across row tiles, so Pallas never re-DMAs them.
    resident = 2 * 2 * d_model * d_ff * wdt          # W1 + W2, double-buffered
    if resident <= int(0.55 * vmem_cap):
        return d_ff
    # Otherwise: largest 128-multiple divisor of d_ff fitting a slab budget.
    budget = int(0.45 * vmem_cap)
    per_ff = 2 * 2 * d_model * wdt                   # slab bytes per unit tile_ff
    cand = max((budget // max(per_ff, 1)) // 128 * 128, 128)
    best = None
    t = 128
    while t <= min(cand, d_ff):
        if d_ff % t == 0:
            best = t
        t += 128
    if best is not None:
        return best
    # No 128-aligned divisor (or nothing fits): full d_ff (block dim equal to
    # the array dim is always legal) or the minimum aligned slab.
    return d_ff if d_ff % 128 != 0 else 128


def _pick_tile_m(rows, sublane, cap):
    # Minimize padding: fewest tiles of size <= cap, but keep >= 2 row tiles
    # when possible so v7x's two TensorCores both get work.
    n_tiles = max(pl.cdiv(rows, cap), 1)
    if n_tiles == 1 and rows > sublane:
        n_tiles = 2
    return _round_up(pl.cdiv(rows, n_tiles), sublane)


def positionwise_pallas(x, w1, b1, w2, b2, gamma, beta, *, eps=1e-6,
                        tile_m=None, tile_ff=None, compute_dtype=None):
    """x: (B, L, d_model). w1: (d_model, d_ff), w2: (d_ff, d_model)."""
    out_dtype = x.dtype
    if compute_dtype is not None:
        # Opt-in reduced-precision MXU feeds (f32 accumulation kept in-kernel).
        x = x.astype(compute_dtype)
        w1 = w1.astype(compute_dtype)
        w2 = w2.astype(compute_dtype)

    B, L, D = x.shape
    d_ff = w1.shape[1]
    rows = B * L

    xdt = jnp.dtype(x.dtype).itemsize
    wdt = jnp.dtype(w1.dtype).itemsize
    vmem_cap = _vmem_capacity_bytes()

    if tile_ff is None:
        tile_ff = _pick_tile_ff(d_ff, D, wdt, vmem_cap)
    assert d_ff % tile_ff == 0
    nj = d_ff // tile_ff
    weights_resident = nj == 1

    if tile_m is None:
        sublane = _sublane_multiple(x.dtype)
        # If weights stay tiled over d_ff, bigger row tiles raise the
        # flops-per-weight-byte ratio; allow 1024 rows when VMEM permits.
        cap = 512 if (weights_resident or vmem_cap < (96 << 20)) else 1024
        tile_m = _pick_tile_m(rows, sublane, cap)

    rows_padded = _round_up(rows, tile_m)

    x2 = x.reshape(rows, D)
    if rows_padded != rows:
        x2 = jnp.pad(x2, ((0, rows_padded - rows), (0, 0)))

    b1r = b1.reshape(1, d_ff)
    b2r = b2.reshape(1, D)
    gr = gamma.reshape(1, D)
    br = beta.reshape(1, D)

    # Serpentine d_ff ordering on odd row tiles: reuses the boundary W1/W2/b1
    # slab between consecutive row tiles when weights are not fully resident.
    def _ff_idx(i, j):
        if nj <= 1:
            return j
        return jnp.where(i % 2 == 0, j, nj - 1 - j)

    odt = jnp.dtype(out_dtype).itemsize
    est = (2 * tile_m * D * xdt            # x tile (double-buffered)
           + 2 * D * tile_ff * wdt         # W1 slab
           + 2 * tile_ff * 4               # b1 slab
           + 2 * tile_ff * D * wdt         # W2 slab
           + 2 * 3 * D * 4                 # b2, gamma, beta
           + 2 * tile_m * D * odt          # out tile
           + tile_m * tile_ff * 4          # hidden intermediate (f32)
           + (tile_m * D * 4 if nj > 1 else 0))   # accumulator scratch
    vmem_limit = int(max(min(est + (4 << 20), vmem_cap - (2 << 20)), 16 << 20))

    kernel = functools.partial(_positionwise_kernel, eps=eps, n_ff_steps=nj)
    acc_shape = (tile_m, D) if nj > 1 else (8, 128)   # unused when nj == 1

    out2 = pl.pallas_call(
        kernel,
        out_shape=jax.ShapeDtypeStruct((rows_padded, D), out_dtype),
        grid_spec=pltpu.PrefetchScalarGridSpec(
            num_scalar_prefetch=0,
            grid=(rows_padded // tile_m, nj),
            in_specs=[
                pl.BlockSpec((tile_m, D), lambda i, j: (i, 0)),               # x
                pl.BlockSpec((D, tile_ff), lambda i, j: (0, _ff_idx(i, j))),  # W1
                pl.BlockSpec((1, tile_ff), lambda i, j: (0, _ff_idx(i, j))),  # b1
                pl.BlockSpec((tile_ff, D), lambda i, j: (_ff_idx(i, j), 0)),  # W2
                pl.BlockSpec((1, D), lambda i, j: (0, 0)),                    # b2
                pl.BlockSpec((1, D), lambda i, j: (0, 0)),                    # ln weight
                pl.BlockSpec((1, D), lambda i, j: (0, 0)),                    # ln bias
            ],
            out_specs=pl.BlockSpec((tile_m, D), lambda i, j: (i, 0)),
            scratch_shapes=[pltpu.VMEM(acc_shape, jnp.float32)],
        ),
        compiler_params=pltpu.CompilerParams(
            dimension_semantics=("parallel", "arbitrary"),
            vmem_limit_bytes=vmem_limit,
        ),
    )(x2, w1, b1r, w2, b2r, gr, br)

    return out2[:rows].reshape(B, L, D)


def init_params(key, d_model, d_ff):
    """Deterministic init mimicking PyTorch Conv1d default (uniform +- 1/sqrt(fan_in))."""
    k1, k2, k3, k4 = jax.random.split(key, 4)
    bound1 = 1.0 / jnp.sqrt(d_model)
    bound2 = 1.0 / jnp.sqrt(d_ff)
    # Conv1d(d_model, d_ff, 1).weight is (d_ff, d_model, 1); stored here as
    # (d_model, d_ff) so the kernel computes x @ W1 directly.
    w1 = jax.random.uniform(k1, (d_model, d_ff), jnp.float32, -bound1, bound1)
    b1 = jax.random.uniform(k2, (d_ff,), jnp.float32, -bound1, bound1)
    w2 = jax.random.uniform(k3, (d_ff, d_model), jnp.float32, -bound2, bound2)
    b2 = jax.random.uniform(k4, (d_model,), jnp.float32, -bound2, bound2)
    gamma = jnp.ones((d_model,), jnp.float32)   # LayerNorm weight
    beta = jnp.zeros((d_model,), jnp.float32)   # LayerNorm bias
    return w1, b1, w2, b2, gamma, beta


def _reference(x, w1, b1, w2, b2, gamma, beta, eps=1e-6):
    h = jnp.maximum(x @ w1 + b1, 0.0)
    o = h @ w2 + b2
    y = x + o
    mu = jnp.mean(y, axis=-1, keepdims=True)
    sigma = jnp.maximum(jnp.std(y, axis=-1, keepdims=True, ddof=1), eps)
    return (y - mu) / sigma * gamma + beta


if __name__ == "__main__":
    # Test 1: small shapes -> resident-weight path (single d_ff slab).
    B, L, d_model, d_ff = 2, 8, 32, 64
    key = jax.random.PRNGKey(0)
    kx, kp = jax.random.split(key)
    x = jax.random.normal(kx, (B, L, d_model), jnp.float32)
    params = init_params(kp, d_model, d_ff)

    out = jax.block_until_ready(positionwise_pallas(x, *params))
    ref = _reference(x, *params)
    assert jnp.allclose(out, ref, atol=1e-4, rtol=1e-4), "mismatch (resident path)"

    # Test 2: forced d_ff tiling + awkward row count -> accumulator, serpentine
    # weight ordering, and row padding paths.
    B2, L2, dm2, df2 = 2, 13, 128, 256
    kx2, kp2 = jax.random.split(jax.random.PRNGKey(1))
    x2 = jax.random.normal(kx2, (B2, L2, dm2), jnp.float32)
    p2 = init_params(kp2, dm2, df2)
    out2 = jax.block_until_ready(positionwise_pallas(x2, *p2, tile_ff=128))
    ref2 = _reference(x2, *p2)
    assert jnp.allclose(out2, ref2, atol=1e-4, rtol=1e-4), "mismatch (tiled path)"

    # Test 3: opt-in bf16 MXU feeds (f32 accumulation), loose tolerance.
    out3 = jax.block_until_ready(
        positionwise_pallas(x, *params, compute_dtype=jnp.bfloat16))
    assert jnp.allclose(out3, ref, atol=5e-2, rtol=5e-2), "mismatch (bf16 path)"

    print("KERNEL_OK")
</pallas_src>

<mosaic_0001>
module attributes {stable_mosaic.version = 11 : i64} {
  func.func @_positionwise_kernel(%arg0: i32, %arg1: i32, %arg2: memref<8x32xf32, #tpu.memory_space<vmem>>, %arg3: memref<32x64xf32, #tpu.memory_space<vmem>>, %arg4: memref<1x64xf32, #tpu.memory_space<vmem>>, %arg5: memref<64x32xf32, #tpu.memory_space<vmem>>, %arg6: memref<1x32xf32, #tpu.memory_space<vmem>>, %arg7: memref<1x32xf32, #tpu.memory_space<vmem>>, %arg8: memref<1x32xf32, #tpu.memory_space<vmem>>, %arg9: memref<8x32xf32, #tpu.memory_space<vmem>>, %arg10: memref<8x128xf32, #tpu.memory_space<vmem>>) attributes {dimension_semantics = [#tpu.dimension_semantics<parallel>, #tpu.dimension_semantics<arbitrary>], iteration_bounds = array<i64: 2, 1>, scalar_prefetch = 0 : i64, scratch_operands = 1 : i64, tpu.core_type = #tpu.core_type<tc>, window_params = [{transform_indices = @transform_0, window_bounds = array<i64: 8, 32>}, {transform_indices = @transform_1, window_bounds = array<i64: 32, 64>}, {transform_indices = @transform_2, window_bounds = array<i64: 1, 64>}, {transform_indices = @transform_3, window_bounds = array<i64: 64, 32>}, {pipeline_mode = #tpu.pipeline_mode<synchronous>, transform_indices = @transform_4, window_bounds = array<i64: 1, 32>}, {pipeline_mode = #tpu.pipeline_mode<synchronous>, transform_indices = @transform_5, window_bounds = array<i64: 1, 32>}, {pipeline_mode = #tpu.pipeline_mode<synchronous>, transform_indices = @transform_6, window_bounds = array<i64: 1, 32>}, {transform_indices = @transform_7, window_bounds = array<i64: 8, 32>}]} {
    %c0 = arith.constant 0 : index
    %c0_0 = arith.constant 0 : index
    %0 = vector.load %arg2[%c0, %c0_0] : memref<8x32xf32, #tpu.memory_space<vmem>>, vector<8x32xf32>
    %c0_1 = arith.constant 0 : index
    %c0_2 = arith.constant 0 : index
    %1 = vector.load %arg3[%c0_1, %c0_2] : memref<32x64xf32, #tpu.memory_space<vmem>>, vector<32x64xf32>
    %cst = arith.constant dense<0.000000e+00> : vector<8x64xf32>
    %2 = tpu.matmul %0, %1, %cst {dimension_numbers = #tpu.dot_dimension_numbers<[1], [0], [0], [1], [0, 0, 1, 1], [], []>} : vector<8x32xf32>, vector<32x64xf32>, vector<8x64xf32> -> vector<8x64xf32>
    %c0_3 = arith.constant 0 : index
    %c0_4 = arith.constant 0 : index
    %3 = vector.load %arg4[%c0_3, %c0_4] : memref<1x64xf32, #tpu.memory_space<vmem>>, vector<1x64xf32>
    %4 = vector.broadcast %3 : vector<1x64xf32> to vector<8x64xf32>
    %5 = arith.addf %2, %4 : vector<8x64xf32>
    %cst_5 = arith.constant 0.000000e+00 : f32
    %6 = vector.broadcast %cst_5 : f32 to vector<8x64xf32>
    %7 = arith.maximumf %5, %6 : vector<8x64xf32>
    %c0_6 = arith.constant 0 : index
    %c0_7 = arith.constant 0 : index
    %8 = vector.load %arg5[%c0_6, %c0_7] : memref<64x32xf32, #tpu.memory_space<vmem>>, vector<64x32xf32>
    %cst_8 = arith.constant dense<0.000000e+00> : vector<8x32xf32>
    %9 = tpu.matmul %7, %8, %cst_8 {dimension_numbers = #tpu.dot_dimension_numbers<[1], [0], [0], [1], [0, 0, 1, 1], [], []>} : vector<8x64xf32>, vector<64x32xf32>, vector<8x32xf32> -> vector<8x32xf32>
    %c0_9 = arith.constant 0 : index
    %c0_10 = arith.constant 0 : index
    %10 = vector.load %arg2[%c0_9, %c0_10] : memref<8x32xf32, #tpu.memory_space<vmem>>, vector<8x32xf32>
    %c0_11 = arith.constant 0 : index
    %c0_12 = arith.constant 0 : index
    %11 = vector.load %arg6[%c0_11, %c0_12] : memref<1x32xf32, #tpu.memory_space<vmem>>, vector<1x32xf32>
    %12 = vector.broadcast %11 : vector<1x32xf32> to vector<8x32xf32>
    %13 = arith.addf %10, %12 : vector<8x32xf32>
    %14 = arith.addf %13, %9 : vector<8x32xf32>
    %c0_13 = arith.constant 0 : index
    %c0_14 = arith.constant 0 : index
    %15 = vector.load %arg7[%c0_13, %c0_14] : memref<1x32xf32, #tpu.memory_space<vmem>>, vector<1x32xf32>
    %c0_15 = arith.constant 0 : index
    %c0_16 = arith.constant 0 : index
    %16 = vector.load %arg8[%c0_15, %c0_16] : memref<1x32xf32, #tpu.memory_space<vmem>>, vector<1x32xf32>
    %cst_17 = arith.constant dense<0.000000e+00> : vector<8xf32>
    %17 = vector.multi_reduction <add>, %14, %cst_17 [1] : vector<8x32xf32> to vector<8xf32>
    %18 = vector.shape_cast %17 : vector<8xf32> to vector<8x1xf32>
    %19 = arith.mulf %14, %14 : vector<8x32xf32>
    %cst_18 = arith.constant dense<0.000000e+00> : vector<8xf32>
    %20 = vector.multi_reduction <add>, %19, %cst_18 [1] : vector<8x32xf32> to vector<8xf32>
    %21 = vector.shape_cast %20 : vector<8xf32> to vector<8x1xf32>
    %cst_19 = arith.constant 3.125000e-02 : f32
    %22 = vector.broadcast %cst_19 : f32 to vector<8x1xf32>
    %23 = arith.mulf %18, %22 : vector<8x1xf32>
    %24 = arith.mulf %18, %23 : vector<8x1xf32>
    %25 = arith.subf %21, %24 : vector<8x1xf32>
    %cst_20 = arith.constant 0.0322580636 : f32
    %26 = vector.broadcast %cst_20 : f32 to vector<8x1xf32>
    %27 = arith.mulf %25, %26 : vector<8x1xf32>
    %cst_21 = arith.constant 0.000000e+00 : f32
    %28 = vector.broadcast %cst_21 : f32 to vector<8x1xf32>
    %29 = arith.maximumf %27, %28 : vector<8x1xf32>
    %30 = math.rsqrt %29 : vector<8x1xf32>
    %cst_22 = arith.constant 1.000000e+06 : f32
    %31 = vector.broadcast %cst_22 : f32 to vector<8x1xf32>
    %32 = arith.minimumf %30, %31 : vector<8x1xf32>
    %33 = vector.broadcast %23 : vector<8x1xf32> to vector<8x32xf32>
    %34 = arith.subf %14, %33 : vector<8x32xf32>
    %35 = vector.broadcast %32 : vector<8x1xf32> to vector<8x32xf32>
    %36 = arith.mulf %34, %35 : vector<8x32xf32>
    %37 = vector.broadcast %15 : vector<1x32xf32> to vector<8x32xf32>
    %38 = arith.mulf %36, %37 : vector<8x32xf32>
    %39 = vector.broadcast %16 : vector<1x32xf32> to vector<8x32xf32>
    %40 = arith.addf %38, %39 : vector<8x32xf32>
    %c0_23 = arith.constant 0 : index
    %c0_24 = arith.constant 0 : index
    %41 = vector.load %arg9[%c0_23, %c0_24] : memref<8x32xf32, #tpu.memory_space<vmem>>, vector<8x32xf32>
    tpu.vector_store %arg9[%c0_23, %c0_24], %40 {strides = array<i32>} : memref<8x32xf32, #tpu.memory_space<vmem>>, vector<8x32xf32>,
    return
  }
  func.func @transform_0(%arg0: i32, %arg1: i32) -> (i32, i32) {
    %c0_i32 = arith.constant 0 : i32
    %c0_i32_0 = arith.constant 0 : i32
    return %arg0, %c0_i32 : i32, i32
  }
  func.func @transform_1(%arg0: i32, %arg1: i32) -> (i32, i32) {
    %c0_i32 = arith.constant 0 : i32
    %c0_i32_0 = arith.constant 0 : i32
    return %c0_i32, %arg1 : i32, i32
  }
  func.func @transform_2(%arg0: i32, %arg1: i32) -> (i32, i32) {
    %c0_i32 = arith.constant 0 : i32
    %c0_i32_0 = arith.constant 0 : i32
    return %c0_i32, %arg1 : i32, i32
  }
  func.func @transform_3(%arg0: i32, %arg1: i32) -> (i32, i32) {
    %c0_i32 = arith.constant 0 : i32
    %c0_i32_0 = arith.constant 0 : i32
    return %arg1, %c0_i32 : i32, i32
  }
  func.func @transform_4(%arg0: i32, %arg1: i32) -> (i32, i32) {
    %c0_i32 = arith.constant 0 : i32
    %c0_i32_0 = arith.constant 0 : i32
    %c0_i32_1 = arith.constant 0 : i32
    return %c0_i32, %c0_i32_0 : i32, i32
  }
  func.func @transform_5(%arg0: i32, %arg1: i32) -> (i32, i32) {
    %c0_i32 = arith.constant 0 : i32
    %c0_i32_0 = arith.constant 0 : i32
    %c0_i32_1 = arith.constant 0 : i32
    return %c0_i32, %c0_i32_0 : i32, i32
  }
  func.func @transform_6(%arg0: i32, %arg1: i32) -> (i32, i32) {
    %c0_i32 = arith.constant 0 : i32
    %c0_i32_0 = arith.constant 0 : i32
    %c0_i32_1 = arith.constant 0 : i32
    return %c0_i32, %c0_i32_0 : i32, i32
  }
  func.func @transform_7(%arg0: i32, %arg1: i32) -> (i32, i32) {
    %c0_i32 = arith.constant 0 : i32
    %c0_i32_0 = arith.constant 0 : i32
    return %arg0, %c0_i32 : i32, i32
  }
}

</mosaic_0001>

<llo_original>
// kernel: tpu_custom_call.1
$region0: #{tpu_custom_call.1}
  #allocation0 [shape = 'u32[]', space=smem, size = 0x4, offset = 0x4, fixed_abs, tag = 'smem constant byte address 0x4 - core index']
  #allocation1 [shape = 'u32[144,128]{1,0:T(1,128)}', space=vmem, size = 0x12000, scoped, tag = 'internal scratch']
  #allocation2 [shape = 'f32[8,128]{1,0:T(8,128)}', space=vmem, size = 0x1000, scoped, tag = 'scratch operand']
  %s0 = inlined_call_operand.vmem [shape: f32[16,32], index: 0, kind: input, shape index: {}]
  %s1 = inlined_call_operand.vmem [shape: f32[32,64], index: 1, kind: input, shape index: {}]
  %s2 = inlined_call_operand.vmem [shape: f32[1,64], index: 2, kind: input, shape index: {}]
  %s3 = inlined_call_operand.vmem [shape: f32[64,32], index: 3, kind: input, shape index: {}]
  %s4 = inlined_call_operand.vmem [shape: f32[1,32], index: 4, kind: input, shape index: {}]
  %s5 = inlined_call_operand.vmem [shape: f32[1,32], index: 5, kind: input, shape index: {}]
  %s6 = inlined_call_operand.vmem [shape: f32[1,32], index: 6, kind: input, shape index: {}]
  %s7 = inlined_call_operand.hbm [shape: f32[16,32], index: 7, kind: output, shape index: {}]
  %s8 = sld [smem:[#allocation0]]
  $region61: #{tpu_custom_call.1} parent=0
    _
  %s10 = ssub.s32 1, %s8
  %s11 = scalar_select 0, %s10, %s8
  $region1: #{tpu_custom_call.1} parent=0
    #allocation3 [shape = 'u8[8192]{0}', space=vmem, size = 0x2000, scoped, tag = 'output window, operand 0']
    #allocation4 [shape = 's32[2]{0}', space=sflag, size = 0x8, scoped, tag = 'scoped memory for tpu_custom_call.1']
    %12 = vsyncpa [#allocation4], 0
    %s13 = scalar_lea.sflag [#allocation4], 1
    %14 = vsyncpa %s13, 0
    loop: start=0, step=1, limit=4
    $region2: #{tpu_custom_call.1} parent=1 // loop_pre_header
      _
    $region3: #{tpu_custom_call.1} parent=1 // loop_header
      %s16 = sphi 0, %s20
      %p17 = scmp.ge.s32.totalorder %s16, 4
      %s23 = sphi 0, %s35
      %s24 = sphi 0, %s31
      %s25 = sphi 0, %s23
      %s26 = sphi 0, %s24
      %s27 = sphi 0, %s25
      %s28 = sphi 0, %s26
      %s38 = sphi 0, %s40
      %s41 = sphi 0, %s38
      %s42 = sphi 0, %s41
      %s58 = sphi 0, %s42
      %s64 = sphi 0, %s66
      %s67 = sphi 0, %s64
      %s68 = sphi 0, %s67
      %s84 = sphi 0, %s68
      %s90 = sphi 0, %s92
      %s93 = sphi 0, %s90
      %s94 = sphi 0, %s93
      %s110 = sphi 0, %s94
      %s116 = sphi 0, %s118
      %s119 = sphi 0, %s116
      %s120 = sphi 0, %s119
      %s136 = sphi 0, %s120
      %s140 = sphi 0, %s140
      %s142 = sphi 0, %s140
      %s143 = sphi 0, %s142
      %s157 = sphi 0, %s143
      %s161 = sphi 0, %s161
      %s163 = sphi 0, %s161
      %s164 = sphi 0, %s163
      %s178 = sphi 0, %s164
      %s182 = sphi 0, %s182
      %s184 = sphi 0, %s182
      %s185 = sphi 0, %s184
      %s199 = sphi 0, %s185
      %s205 = sphi 0, %s207
      %s208 = sphi 0, %s205
      %s209 = sphi 0, %s208
      %s225 = sphi 0, %s209
    $region4: #{tpu_custom_call.1} parent=1 // loop_header_branch
      %19 = sbr.rel (%p17) target = $region8
    $region5: #{tpu_custom_call.1} parent=1 // loop_body
      %s21 = ssub.s32 %s16, 1
      %s22 = ssub.s32 %s16, 2
      %s29 = sadd.s32 1, %s24
      %p30 = scmp.ge.s32.totalorder %s29, 1
      %s31 = scalar_select %p30, 0, %s29
      %s32 = sadd.s32 1, %s23
      %s33 = scalar_select %p30, %s32, %s23
      %p34 = scmp.ge.s32.totalorder %s33, 2
      %s35 = scalar_select %p34, 0, %s33
      %s36 = ssub.s32 %s23, %s35
      %p37 = scmp.eq.s32.totalorder %s36, 0
      %s39 = sadd.s32 %s38, 1
      %s40 = scalar_select %p37, %s38, %s39
      %p43 = pneg %p37
      %p44 = scmp.eq.s32.totalorder %s16, 1
      %p45 = por %p43, %p44
      %p46 = scmp.ne.s32.totalorder %s38, %s41
      %p47 = scmp.eq.s32.totalorder %s16, 0
      %p48 = por %p46, %p47
      %p49 = scmp.ne.s32.totalorder %s38, %s41
      %p50 = scmp.eq.s32.totalorder %s21, 1
      %p51 = por %p49, %p50
      %p52 = scmp.ne.s32.totalorder %s41, %s42
      %p53 = scmp.eq.s32.totalorder %s21, 0
      %p54 = por %p52, %p53
      %p55 = scmp.ne.s32.totalorder %s41, %s42
      %p56 = scmp.eq.s32.totalorder %s22, 1
      %p57 = por %p55, %p56
      %p59 = scmp.ne.s32.totalorder %s42, %s58
      %p60 = scmp.eq.s32.totalorder %s22, 0
      %p61 = por %p59, %p60
      %s62 = ssub.s32 %s24, %s31
      %p63 = scmp.eq.s32.totalorder %s62, 0
      %s65 = sadd.s32 %s64, 1
      %s66 = scalar_select %p63, %s64, %s65
      %p69 = pneg %p63
      %p70 = scmp.eq.s32.totalorder %s16, 1
      %p71 = por %p69, %p70
      %p72 = scmp.ne.s32.totalorder %s64, %s67
      %p73 = scmp.eq.s32.totalorder %s16, 0
      %p74 = por %p72, %p73
      %p75 = scmp.ne.s32.totalorder %s64, %s67
      %p76 = scmp.eq.s32.totalorder %s21, 1
      %p77 = por %p75, %p76
      %p78 = scmp.ne.s32.totalorder %s67, %s68
      %p79 = scmp.eq.s32.totalorder %s21, 0
      %p80 = por %p78, %p79
      %p81 = scmp.ne.s32.totalorder %s67, %s68
      %p82 = scmp.eq.s32.totalorder %s22, 1
      %p83 = por %p81, %p82
      %p85 = scmp.ne.s32.totalorder %s68, %s84
      %p86 = scmp.eq.s32.totalorder %s22, 0
      %p87 = por %p85, %p86
      %s88 = ssub.s32 %s24, %s31
      %p89 = scmp.eq.s32.totalorder %s88, 0
      %s91 = sadd.s32 %s90, 1
      %s92 = scalar_select %p89, %s90, %s91
      %p95 = pneg %p89
      %p96 = scmp.eq.s32.totalorder %s16, 1
      %p97 = por %p95, %p96
      %p98 = scmp.ne.s32.totalorder %s90, %s93
      %p99 = scmp.eq.s32.totalorder %s16, 0
      %p100 = por %p98, %p99
      %p101 = scmp.ne.s32.totalorder %s90, %s93
      %p102 = scmp.eq.s32.totalorder %s21, 1
      %p103 = por %p101, %p102
      %p104 = scmp.ne.s32.totalorder %s93, %s94
      %p105 = scmp.eq.s32.totalorder %s21, 0
      %p106 = por %p104, %p105
      %p107 = scmp.ne.s32.totalorder %s93, %s94
      %p108 = scmp.eq.s32.totalorder %s22, 1
      %p109 = por %p107, %p108
      %p111 = scmp.ne.s32.totalorder %s94, %s110
      %p112 = scmp.eq.s32.totalorder %s22, 0
      %p113 = por %p111, %p112
      %s114 = ssub.s32 %s24, %s31
      %p115 = scmp.eq.s32.totalorder %s114, 0
      %s117 = sadd.s32 %s116, 1
      %s118 = scalar_select %p115, %s116, %s117
      %p121 = pneg %p115
      %p122 = scmp.eq.s32.totalorder %s16, 1
      %p123 = por %p121, %p122
      %p124 = scmp.ne.s32.totalorder %s116, %s119
      %p125 = scmp.eq.s32.totalorder %s16, 0
      %p126 = por %p124, %p125
      %p127 = scmp.ne.s32.totalorder %s116, %s119
      %p128 = scmp.eq.s32.totalorder %s21, 1
      %p129 = por %p127, %p128
      %p130 = scmp.ne.s32.totalorder %s119, %s120
      %p131 = scmp.eq.s32.totalorder %s21, 0
      %p132 = por %p130, %p131
      %p133 = scmp.ne.s32.totalorder %s119, %s120
      %p134 = scmp.eq.s32.totalorder %s22, 1
      %p135 = por %p133, %p134
      %p137 = scmp.ne.s32.totalorder %s120, %s136
      %p138 = scmp.eq.s32.totalorder %s22, 0
      %p139 = por %p137, %p138
      %s141 = sadd.s32 %s140, 1
      %p144 = scmp.eq.s32.totalorder %s16, 1
      %p145 = scmp.ne.s32.totalorder %s140, %s142
      %p146 = scmp.eq.s32.totalorder %s16, 0
      %p147 = por %p145, %p146
      %p148 = scmp.ne.s32.totalorder %s140, %s142
      %p149 = scmp.eq.s32.totalorder %s21, 1
      %p150 = por %p148, %p149
      %p151 = scmp.ne.s32.totalorder %s142, %s143
      %p152 = scmp.eq.s32.totalorder %s21, 0
      %p153 = por %p151, %p152
      %p154 = scmp.ne.s32.totalorder %s142, %s143
      %p155 = scmp.eq.s32.totalorder %s22, 1
      %p156 = por %p154, %p155
      %p158 = scmp.ne.s32.totalorder %s143, %s157
      %p159 = scmp.eq.s32.totalorder %s22, 0
      %p160 = por %p158, %p159
      %s162 = sadd.s32 %s161, 1
      %p165 = scmp.eq.s32.totalorder %s16, 1
      %p166 = scmp.ne.s32.totalorder %s161, %s163
      %p167 = scmp.eq.s32.totalorder %s16, 0
      %p168 = por %p166, %p167
      %p169 = scmp.ne.s32.totalorder %s161, %s163
      %p170 = scmp.eq.s32.totalorder %s21, 1
      %p171 = por %p169, %p170
      %p172 = scmp.ne.s32.totalorder %s163, %s164
      %p173 = scmp.eq.s32.totalorder %s21, 0
      %p174 = por %p172, %p173
      %p175 = scmp.ne.s32.totalorder %s163, %s164
      %p176 = scmp.eq.s32.totalorder %s22, 1
      %p177 = por %p175, %p176
      %p179 = scmp.ne.s32.totalorder %s164, %s178
      %p180 = scmp.eq.s32.totalorder %s22, 0
      %p181 = por %p179, %p180
      %s183 = sadd.s32 %s182, 1
      %p186 = scmp.eq.s32.totalorder %s16, 1
      %p187 = scmp.ne.s32.totalorder %s182, %s184
      %p188 = scmp.eq.s32.totalorder %s16, 0
      %p189 = por %p187, %p188
      %p190 = scmp.ne.s32.totalorder %s182, %s184
      %p191 = scmp.eq.s32.totalorder %s21, 1
      %p192 = por %p190, %p191
      %p193 = scmp.ne.s32.totalorder %s184, %s185
      %p194 = scmp.eq.s32.totalorder %s21, 0
      %p195 = por %p193, %p194
      %p196 = scmp.ne.s32.totalorder %s184, %s185
      %p197 = scmp.eq.s32.totalorder %s22, 1
      %p198 = por %p196, %p197
      %p200 = scmp.ne.s32.totalorder %s185, %s199
      %p201 = scmp.eq.s32.totalorder %s22, 0
      %p202 = por %p200, %p201
      %s203 = ssub.s32 %s23, %s35
      %p204 = scmp.eq.s32.totalorder %s203, 0
      %s206 = sadd.s32 %s205, 1
      %s207 = scalar_select %p204, %s205, %s206
      %p210 = pneg %p204
      %p211 = scmp.eq.s32.totalorder %s16, 1
      %p212 = por %p210, %p211
      %p213 = scmp.ne.s32.totalorder %s205, %s208
      %p214 = scmp.eq.s32.totalorder %s16, 0
      %p215 = por %p213, %p214
      %p216 = scmp.ne.s32.totalorder %s205, %s208
      %p217 = scmp.eq.s32.totalorder %s21, 1
      %p218 = por %p216, %p217
      %p219 = scmp.ne.s32.totalorder %s208, %s209
      %p220 = scmp.eq.s32.totalorder %s21, 0
      %p221 = por %p219, %p220
      %p222 = scmp.ne.s32.totalorder %s208, %s209
      %p223 = scmp.eq.s32.totalorder %s22, 1
      %p224 = por %p222, %p223
      %p226 = scmp.ne.s32.totalorder %s209, %s225
      %p227 = scmp.eq.s32.totalorder %s22, 0
      %p228 = por %p226, %p227
      %p229 = scmp.le.s32.totalorder 1, %s16
      %p230 = scmp.lt.s32.totalorder %s16, 3
      %p231 = pnand %p229, %p230
      %p232 = pneg %p231
      // Predicated region
      $region9: #{tpu_custom_call.1} parent=5 // pred_check
        _
      $region10: #{tpu_custom_call.1} parent=5 // pred_check_branch
        %234 = sbr.rel (%p231) target = $region12
      $region11: #{tpu_custom_call.1} parent=5 // pred_region
        %s235 = ssub.s32 %s16, 1
        // Predicated region
        $region13: #{tpu_custom_call.1} parent=11 // pred_check
          %p236 = pneg %p80
        $region14: #{tpu_custom_call.1} parent=11 // pred_check_branch
          %238 = sbr.rel (%p236) target = $region16
        $region15: #{tpu_custom_call.1} parent=11 // pred_region
          %p239 = scmp.lt.s32.totalorder %s26, 0
          %s240 = scalar_select %p239, %s26, 0
          %s241 = smul.addr %s240, 8
          %s242 = scalar_lea.vmem %s1, %s241
        $region16: #{tpu_custom_call.1} parent=11 // pred_fallthru
          _
        // Predicated region
        $region17: #{tpu_custom_call.1} parent=11 // pred_check
          %p243 = pneg %p106
        $region18: #{tpu_custom_call.1} parent=11 // pred_check_branch
          %245 = sbr.rel (%p243) target = $region20
        $region19: #{tpu_custom_call.1} parent=11 // pred_region
          %p246 = scmp.lt.s32.totalorder %s26, 0
          %s247 = scalar_select %p246, %s26, 0
          %s248 = scalar_lea.vmem %s2, %s247
        $region20: #{tpu_custom_call.1} parent=11 // pred_fallthru
          _
        // Predicated region
        $region21: #{tpu_custom_call.1} parent=11 // pred_check
          %p249 = pneg %p132
        $region22: #{tpu_custom_call.1} parent=11 // pred_check_branch
          %251 = sbr.rel (%p249) target = $region24
        $region23: #{tpu_custom_call.1} parent=11 // pred_region
          %s252 = smul.u32 8, %s26
          %p253 = scmp.lt.s32.totalorder %s252, 7
          %s254 = scalar_select %p253, %s252, 7
          %s255 = smul.addr %s254, 8
          %s256 = scalar_lea.vmem %s3, %s255
          %s257 = smul.u32 8, %s26
        $region24: #{tpu_custom_call.1} parent=11 // pred_fallthru
          _
        // Predicated region
        $region25: #{tpu_custom_call.1} parent=11 // pred_check
          %p258 = pneg %p153
        $region26: #{tpu_custom_call.1} parent=11 // pred_check_branch
          %260 = sbr.rel (%p258) target = $region28
        $region27: #{tpu_custom_call.1} parent=11 // pred_region
          _
        $region28: #{tpu_custom_call.1} parent=11 // pred_fallthru
          _
        // Predicated region
        $region29: #{tpu_custom_call.1} parent=11 // pred_check
          %p261 = pneg %p174
        $region30: #{tpu_custom_call.1} parent=11 // pred_check_branch
          %263 = sbr.rel (%p261) target = $region32
        $region31: #{tpu_custom_call.1} parent=11 // pred_region
          _
        $region32: #{tpu_custom_call.1} parent=11 // pred_fallthru
          _
        // Predicated region
        $region33: #{tpu_custom_call.1} parent=11 // pred_check
          %p264 = pneg %p195
        $region34: #{tpu_custom_call.1} parent=11 // pred_check_branch
          %266 = sbr.rel (%p264) target = $region36
        $region35: #{tpu_custom_call.1} parent=11 // pred_region
          _
        $region36: #{tpu_custom_call.1} parent=11 // pred_fallthru
          _
      $region12: #{tpu_custom_call.1} parent=5 // pred_fallthru
        _
      %p267 = scmp.lt.s32.totalorder %s16, 2
      // Predicated region
      $region37: #{tpu_custom_call.1} parent=5 // pred_check
        %p268 = pneg %p267
      $region38: #{tpu_custom_call.1} parent=5 // pred_check_branch
        %270 = sbr.rel (%p268) target = $region40
      $region39: #{tpu_custom_call.1} parent=5 // pred_region
        // Predicated region
        $region41: #{tpu_custom_call.1} parent=39 // pred_check
          %p271 = pneg %p48
        $region42: #{tpu_custom_call.1} parent=39 // pred_check_branch
          %273 = sbr.rel (%p271) target = $region44
        $region43: #{tpu_custom_call.1} parent=39 // pred_region
          %p274 = scmp.lt.s32.totalorder %s23, 1
          %s275 = scalar_select %p274, %s23, 1
          %s276 = smul.addr %s275, 8
          %s277 = scalar_lea.vmem %s0, %s276
        $region44: #{tpu_custom_call.1} parent=39 // pred_fallthru
          _
      $region40: #{tpu_custom_call.1} parent=5 // pred_fallthru
        _
      %p278 = scmp.le.s32.totalorder 1, %s16
      %p279 = scmp.lt.s32.totalorder %s16, 3
      %p280 = pnand %p278, %p279
      %p281 = pneg %p280
      // Predicated region
      $region45: #{tpu_custom_call.1} parent=5 // pred_check
        _
      $region46: #{tpu_custom_call.1} parent=5 // pred_check_branch
        %283 = sbr.rel (%p280) target = $region48
      $region47: #{tpu_custom_call.1} parent=5 // pred_region
        %s284 = ssub.s32 %s16, 1
        %p285 = scmp.lt.s32.totalorder %s25, 1
        %s286 = scalar_select %p285, %s25, 1
        %s287 = smul.addr %s286, 8
        %s288 = scalar_lea.vmem %s0, %s287
        %p289 = pneg %p54
        %p290 = pneg %p51
        %p291 = scmp.lt.s32.totalorder %s26, 0
        %s292 = scalar_select %p291, %s26, 0
        %s293 = smul.addr %s292, 8
        %s294 = scalar_lea.vmem %s1, %s293
        %p295 = pneg %p80
        %p296 = pneg %p77
        %p297 = scmp.lt.s32.totalorder %s26, 0
        %s298 = scalar_select %p297, %s26, 0
        %s299 = scalar_lea.vmem %s2, %s298
        %p300 = pneg %p106
        %p301 = pneg %p103
        %s302 = smul.u32 8, %s26
        %p303 = scmp.lt.s32.totalorder %s302, 7
        %s304 = scalar_select %p303, %s302, 7
        %s305 = smul.addr %s304, 8
        %s306 = scalar_lea.vmem %s3, %s305
        %p307 = pneg %p132
        %p308 = pneg %p129
        %p309 = pneg %p153
        %p310 = pneg %p150
        %p311 = pneg %p174
        %p312 = pneg %p171
        %p313 = pneg %p195
        %p314 = pneg %p192
        %p315 = pneg %p221
        %p316 = pneg %p218
        %s317 = sand.u32 %s208, 1
        %s318 = scalar_lea.sflag [#allocation4], %s317
        %s319 = sand.u32 %s208, 1
        %s320 = smul.addr %s319, 8
        %s321 = scalar_lea.vmem [#allocation3], %s320
        %p322 = scmp.lt.s32.totalorder %s25, 1
        %s323 = scalar_select %p322, %s25, 1
        %s324 = smul.addr %s323, 8
        %s325 = scalar_lea.vmem %s0, %s324
        %p326 = scmp.lt.s32.totalorder %s26, 0
        %s327 = scalar_select %p326, %s26, 0
        %s328 = smul.addr %s327, 8
        %s329 = scalar_lea.vmem %s1, %s328
        %p330 = scmp.lt.s32.totalorder %s26, 0
        %s331 = scalar_select %p330, %s26, 0
        %s332 = scalar_lea.vmem %s2, %s331
        %s333 = smul.u32 8, %s26
        %p334 = scmp.lt.s32.totalorder %s333, 7
        %s335 = scalar_select %p334, %s333, 7
        %s336 = smul.addr %s335, 8
        %s337 = scalar_lea.vmem %s3, %s336
        %s338 = smul.u32 8, %s26
        %v339 = vld [vmem:[%s325] sm:$0xff]
        %v340 = vld [vmem:[%s329] sm:$0xff]
        %v341 = vld [vmem:[%s329 + $0x8] sm:$0xff]
        %v342 = vld [vmem:[%s329 + $0x10] sm:$0xff]
        %v343 = vld [vmem:[%s329 + $0x18] sm:$0xff]
        %v344 = vld [vmem:[%s332] sm:$0x1]
        %v346 = vlaneseq
        %v347 = vshrl.u32 %v346, 7
        %v348 = vsub.s32 0, %v347
        %v349 = vrot.slane %v344, %v348
        %vm351 = vcmask 261120
        %v353 = vsel %vm351, %v339, 0
        %355 = vmatprep.subr.mxu0 0.0
        %356 = vmatpush1.msra.mxu0 0.0
        %357 = vmatprep.subr.mxu0 0.0
        %358 = vmatpush1.msra.mxu0 0.0
        %359 = vmatprep.subr.mxu0 0.0
        %360 = vmatpush1.msra.mxu0 0.0
        %361 = vmatprep.subr.mxu0 0.0
        %362 = vmatpush1.msra.mxu0 0.0
        %363 = vmatprep.subr.mxu0 0.0
        %364 = vmatpush1.msra.mxu0 0.0
        %365 = vmatprep.subr.mxu0 0.0
        %366 = vmatpush1.msra.mxu0 0.0
        %367 = vmatprep.subr.mxu0 0.0
        %368 = vmatpush1.msra.mxu0 0.0
        %369 = vmatprep.subr.mxu0 0.0
        %370 = vmatpush1.msra.mxu0 0.0
        %371 = vmatprep.subr.mxu0 0.0
        %372 = vmatpush1.msra.mxu0 0.0
        %373 = vmatprep.subr.mxu0 0.0
        %374 = vmatpush1.msra.mxu0 0.0
        %375 = vmatprep.subr.mxu0 0.0
        %376 = vmatpush1.msra.mxu0 0.0
        %377 = vmatprep.subr.mxu0 0.0
        %378 = vmatpush1.msra.mxu0 0.0
        %379 = vmatprep.subr.mxu0 0.0
        %380 = vmatpush1.msra.mxu0 %v343
        %381 = vmatprep.subr.mxu0 0.0
        %382 = vmatpush1.msra.mxu0 %v342
        %383 = vmatprep.subr.mxu0 0.0
        %384 = vmatpush1.msra.mxu0 %v341
        %385 = vmatprep.subr.mxu0 0.0
        %386 = vmatpush1.msra.mxu0 %v340
        %387 = vmatprep.subr.mxu0 0.0
        %388 = vmatpush2.msra.mxu0 0.0
        %389 = vmatprep.subr.mxu0 0.0
        %390 = vmatpush2.msra.mxu0 0.0
        %391 = vmatprep.subr.mxu0 0.0
        %392 = vmatpush2.msra.mxu0 0.0
        %393 = vmatprep.subr.mxu0 0.0
        %394 = vmatpush2.msra.mxu0 0.0
        %395 = vmatprep.subr.mxu0 0.0
        %396 = vmatpush2.msra.mxu0 0.0
        %397 = vmatprep.subr.mxu0 0.0
        %398 = vmatpush2.msra.mxu0 0.0
        %399 = vmatprep.subr.mxu0 0.0
        %400 = vmatpush2.msra.mxu0 0.0
        %401 = vmatprep.subr.mxu0 0.0
        %402 = vmatpush2.msra.mxu0 0.0
        %403 = vmatprep.subr.mxu0 0.0
        %404 = vmatpush2.msra.mxu0 0.0
        %405 = vmatprep.subr.mxu0 0.0
        %406 = vmatpush2.msra.mxu0 0.0
        %407 = vmatprep.subr.mxu0 0.0
        %408 = vmatpush2.msra.mxu0 0.0
        %409 = vmatprep.subr.mxu0 0.0
        %410 = vmatpush2.msra.mxu0 0.0
        %411 = vmatprep.subr.mxu0 0.0
        %412 = vmatpush2.msra.mxu0 0.0
        %413 = vmatprep.subr.mxu0 0.0
        %414 = vmatpush2.msra.mxu0 0.0
        %415 = vmatprep.subr.mxu0 0.0
        %416 = vmatpush2.msra.mxu0 0.0
        %417 = vmatprep.subr.mxu0 0.0
        %418 = vmatpush2.msra.mxu0 0.0
        %419 = vmatprep.mubr.f32.mxu0 0.0
        %420 = vmatmul.mubr.f32.gmra.mxu0 %v353
        %v421 = vpop.f32.mrf.mxu0
        %v422 = vadd.f32 %v349, %v421
        %v423 = vpop.f32.mrf.mxu0
        %424 = vdwg.mxu0
        %v425 = vmax.f32 %v422, 0.0
        %v426 = vld [vmem:[%s337] sm:$0xff]
        %v427 = vld [vmem:[%s337 + $0x8] sm:$0xff]
        %v428 = vld [vmem:[%s337 + $0x10] sm:$0xff]
        %v429 = vld [vmem:[%s337 + $0x18] sm:$0xff]
        %v430 = vld [vmem:[%s337 + $0x20] sm:$0xff]
        %v431 = vld [vmem:[%s337 + $0x28] sm:$0xff]
        %v432 = vld [vmem:[%s337 + $0x30] sm:$0xff]
        %v433 = vld [vmem:[%s337 + $0x38] sm:$0xff]
        %vm434 = vcmask 523264
        %v436 = vsel %vm434, %v425, 0
        %438 = vmatprep.subr.mxu0 0.0
        %439 = vmatpush1.msra.mxu0 0.0
        %440 = vmatprep.subr.mxu0 0.0
        %441 = vmatpush1.msra.mxu0 0.0
        %442 = vmatprep.subr.mxu0 0.0
        %443 = vmatpush1.msra.mxu0 0.0
        %444 = vmatprep.subr.mxu0 0.0
        %445 = vmatpush1.msra.mxu0 0.0
        %446 = vmatprep.subr.mxu0 0.0
        %447 = vmatpush1.msra.mxu0 0.0
        %448 = vmatprep.subr.mxu0 0.0
        %449 = vmatpush1.msra.mxu0 0.0
        %450 = vmatprep.subr.mxu0 0.0
        %451 = vmatpush1.msra.mxu0 0.0
        %452 = vmatprep.subr.mxu0 0.0
        %453 = vmatpush1.msra.mxu0 0.0
        %454 = vmatprep.subr.mxu0 0.0
        %455 = vmatpush1.msra.mxu0 %v433
        %456 = vmatprep.subr.mxu0 0.0
        %457 = vmatpush1.msra.mxu0 %v432
        %458 = vmatprep.subr.mxu0 0.0
        %459 = vmatpush1.msra.mxu0 %v431
        %460 = vmatprep.subr.mxu0 0.0
        %461 = vmatpush1.msra.mxu0 %v430
        %462 = vmatprep.subr.mxu0 0.0
        %463 = vmatpush1.msra.mxu0 %v429
        %464 = vmatprep.subr.mxu0 0.0
        %465 = vmatpush1.msra.mxu0 %v428
        %466 = vmatprep.subr.mxu0 0.0
        %467 = vmatpush1.msra.mxu0 %v427
        %468 = vmatprep.subr.mxu0 0.0
        %469 = vmatpush1.msra.mxu0 %v426
        %470 = vmatprep.subr.mxu0 0.0
        %471 = vmatpush2.msra.mxu0 0.0
        %472 = vmatprep.subr.mxu0 0.0
        %473 = vmatpush2.msra.mxu0 0.0
        %474 = vmatprep.subr.mxu0 0.0
        %475 = vmatpush2.msra.mxu0 0.0
        %476 = vmatprep.subr.mxu0 0.0
        %477 = vmatpush2.msra.mxu0 0.0
        %478 = vmatprep.subr.mxu0 0.0
        %479 = vmatpush2.msra.mxu0 0.0
        %480 = vmatprep.subr.mxu0 0.0
        %481 = vmatpush2.msra.mxu0 0.0
        %482 = vmatprep.subr.mxu0 0.0
        %483 = vmatpush2.msra.mxu0 0.0
        %484 = vmatprep.subr.mxu0 0.0
        %485 = vmatpush2.msra.mxu0 0.0
        %486 = vmatprep.subr.mxu0 0.0
        %487 = vmatpush2.msra.mxu0 0.0
        %488 = vmatprep.subr.mxu0 0.0
        %489 = vmatpush2.msra.mxu0 0.0
        %490 = vmatprep.subr.mxu0 0.0
        %491 = vmatpush2.msra.mxu0 0.0
        %492 = vmatprep.subr.mxu0 0.0
        %493 = vmatpush2.msra.mxu0 0.0
        %494 = vmatprep.subr.mxu0 0.0
        %495 = vmatpush2.msra.mxu0 0.0
        %496 = vmatprep.subr.mxu0 0.0
        %497 = vmatpush2.msra.mxu0 0.0
        %498 = vmatprep.subr.mxu0 0.0
        %499 = vmatpush2.msra.mxu0 0.0
        %500 = vmatprep.subr.mxu0 0.0
        %501 = vmatpush2.msra.mxu0 0.0
        %502 = vmatprep.mubr.f32.mxu0 0.0
        %503 = vmatmul.mubr.f32.gmra.mxu0 %v436
        %v504 = vpop.f32.mrf.mxu0
        %v505 = vadd.f32 0.0, %v504
        %v506 = vpop.f32.mrf.mxu0
        %507 = vdwg.mxu0
        %v508 = vld [vmem:[%s4] sm:$0x1]
        %v510 = vlaneseq
        %v511 = vshrl.u32 %v510, 7
        %v512 = vsub.s32 0, %v511
        %v513 = vrot.slane %v508, %v512
        %v515 = vadd.f32 %v339, %v513
        %v516 = vadd.f32 %v515, %v505
        %v517 = vld [vmem:[%s5] sm:$0x1]
        %v518 = vld [vmem:[%s6] sm:$0x1]
        %v519 = vsel %vm351, %v516, 0.0
        %520 = vadd.xlane.f32.xlu0 %v519
        %v521 = vpop.xlane.xlu0 %520
        %v522 = vmul.f32 %v516, %v516
        %v523 = vsel %vm351, %v522, 0.0
        %524 = vadd.xlane.f32.xlu0 %v523
        %v525 = vpop.xlane.xlu0 %524
        %v526 = vmul.f32 %v521, 0.03125
        %v527 = vmul.f32 %v521, %v526
        %v528 = vsub.f32 %v525, %v527
        %v529 = vmul.f32 %v528, 0.032258064
        %v530 = vmax.f32 %v529, 0.0
        %v531 = vrsqrt.pop %v530
        %v532 = vmin.f32 %v531, 1000000.0
        %v533 = vsub.f32 %v516, %v526
        %v534 = vmul.f32 %v533, %v532
        %v536 = vlaneseq
        %v537 = vshrl.u32 %v536, 7
        %v538 = vsub.s32 0, %v537
        %v539 = vrot.slane %v517, %v538
        %v541 = vmul.f32 %v534, %v539
        %v543 = vlaneseq
        %v544 = vshrl.u32 %v543, 7
        %v545 = vsub.s32 0, %v544
        %v546 = vrot.slane %v518, %v545
        %v548 = vadd.f32 %v541, %v546
        %549 = vst.msk [vmem:[%s321] sm:$0xff] %vm351, %v548
        %s550 = sand.u32 %s208, 1
        %s551 = scalar_lea.sflag [#allocation4], %s550
        %s552 = sand.u32 %s208, 1
        %s553 = smul.addr %s552, 8
        %s554 = scalar_lea.vmem [#allocation3], %s553
        // Predicated region
        $region49: #{tpu_custom_call.1} parent=47 // pred_check
          %p555 = pneg %p218
        $region50: #{tpu_custom_call.1} parent=47 // pred_check_branch
          %557 = sbr.rel (%p555) target = $region52
        $region51: #{tpu_custom_call.1} parent=47 // pred_region
          %s559 = ssub.s32 128, 128
          %560 = vsyncadd %s551, %s559
          %s561 = smul.addr %s25, 128
          %s562 = scalar_lea.hbm %s7, %s561
          %s564 = sshll.u32 %s554, 4
          %s565 = int_to_ptr.vmem [resolvable:$true] %s564
          %567 = dma.vmem_to_hbm [thread:$0]  %s565, 128, %s562, %s551
        $region52: #{tpu_custom_call.1} parent=47 // pred_fallthru
          _
      $region48: #{tpu_custom_call.1} parent=5 // pred_fallthru
        _
      %p568 = scmp.le.s32.totalorder 2, %s16
      // Predicated region
      $region53: #{tpu_custom_call.1} parent=5 // pred_check
        %p569 = pneg %p568
      $region54: #{tpu_custom_call.1} parent=5 // pred_check_branch
        %571 = sbr.rel (%p569) target = $region56
      $region55: #{tpu_custom_call.1} parent=5 // pred_region
        %s572 = ssub.s32 %s16, 2
        // Predicated region
        $region57: #{tpu_custom_call.1} parent=55 // pred_check
          %p573 = pneg %p224
        $region58: #{tpu_custom_call.1} parent=55 // pred_check_branch
          %575 = sbr.rel (%p573) target = $region60
        $region59: #{tpu_custom_call.1} parent=55 // pred_region
          %s576 = sand.u32 %s209, 1
          %s577 = scalar_lea.sflag [#allocation4], %s576
          %s578 = sand.u32 %s209, 1
          %s579 = smul.addr %s578, 8
          %s580 = scalar_lea.vmem [#allocation3], %s579
          %581 = dma.done %s577, 128
        $region60: #{tpu_custom_call.1} parent=55 // pred_fallthru
          _
      $region56: #{tpu_custom_call.1} parent=5 // pred_fallthru
        _
    $region6: #{tpu_custom_call.1} parent=1 // loop_footer
      %s20 = sadd.s32 1, %s16
    $region7: #{tpu_custom_call.1} parent=1 // loop_footer_branch
      %15 = sbr.rel target = $region3
    $region8: #{tpu_custom_call.1} parent=1 // loop_exit
      _
    %582 = vsyncpa [#allocation4], 1
    %s583 = scalar_lea.sflag [#allocation4], 1
    %584 = vsyncpa %s583, 1

</llo_original>
